<compile_context>
chip_gen: v5e
topology: v5e:2x2
jax: 0.10.0
libtpu: 0.0.40
codegen_flags: <defaults>
</compile_context>

<pallas_src>
import jax
import jax.numpy as jnp
from jax.experimental import pallas as pl
from jax.experimental.pallas import tpu as pltpu

EPS = 1e-12


def _nalu_kernel_fused_gate(x_ref, w_ref, o_ref):
    """w_ref = [W_eff | G] with shape (in_dim, out_dim + 1); gate column last."""
    out_dim = o_ref.shape[1]
    x = x_ref[...].astype(jnp.float32)                    # (tb, in_dim)
    log_x = jnp.log(jnp.abs(x) + EPS)                     # (tb, in_dim)
    w = w_ref[...]                                        # (in_dim, out_dim+1)

    # Two MXU calls against the same resident RHS.  Both use the full
    # augmented weight: out_dim+1 stays inside one 128-lane group, so the
    # extra column costs no additional MXU tiles and avoids a lane-slice copy.
    res_add = jnp.dot(x, w, preferred_element_type=jnp.float32)       # (tb, out_dim+1)
    res_mul = jnp.dot(log_x, w, preferred_element_type=jnp.float32)   # (tb, out_dim+1)

    gate = jax.nn.sigmoid(res_add[:, out_dim:out_dim + 1])            # (tb, 1)
    nac_x = res_add[:, :out_dim]                                      # x @ W.T
    exp_l = jnp.exp(res_mul[:, :out_dim])                             # exp(log|x| @ W.T)

    # g*nac_x + (1-g)*exp_l == exp_l + g*(nac_x - exp_l)
    o_ref[...] = (exp_l + gate * (nac_x - exp_l)).astype(o_ref.dtype)


def _nalu_kernel_split_gate(x_ref, w_ref, g_ref, o_ref):
    """w_ref: (in_dim, out_dim); g_ref: (1, in_dim).

    Used when out_dim % 128 == 0: appending a gate column would add a whole
    extra 128-lane output tile to every matmul and to the resident weights."""
    x = x_ref[...].astype(jnp.float32)
    log_x = jnp.log(jnp.abs(x) + EPS)
    w = w_ref[...]

    nac_x = jnp.dot(x, w, preferred_element_type=jnp.float32)
    nac_l = jnp.dot(log_x, w, preferred_element_type=jnp.float32)

    # Gate = sigmoid(x @ G.T) via VPU multiply + XLU lane-reduce (no N=1 matmul).
    gate = jax.nn.sigmoid(jnp.sum(x * g_ref[...], axis=1, keepdims=True))  # (tb, 1)

    exp_l = jnp.exp(nac_l)
    o_ref[...] = (exp_l + gate * (nac_x - exp_l)).astype(o_ref.dtype)


def _choose_tile_b(batch, in_dim, out_dim):
    """Adaptive batch tile (rows per grid step)."""
    if batch < 16:
        # Tiny batch: single full-extent block (a megacore split would need
        # sub-8-row blocks, which is neither layout-legal nor worth it).
        return batch
    # ~2 MiB of x per grid step amortizes the ~0.35 us per-step overhead.
    target = (2 << 20) // (4 * in_dim)
    # VMEM budget: double-buffered x + out tiles plus ~4 f32 temporaries
    # (log_x, two dot results, exp/blend) per row.  Stay well under the 32 MiB
    # default-scoped VMEM so the same tile is safe on v7x (64 MiB physical)
    # without raising vmem_limit_bytes.
    per_row = 4 * (2 * in_dim + 2 * out_dim + 4 * max(in_dim, out_dim))
    vmem_cap = (24 << 20) // per_row
    # >= 2 grid steps so dimension_semantics=("parallel",) can feed both v7x
    # TensorCores (no-op on v5e/v6e, which have a single TC).
    two_steps = -(-batch // 2)
    tb = min(target, vmem_cap, two_steps)
    return max(8, (tb // 8) * 8)


def nalu_forward(x, G, W_hat, M_hat):
    """NALU forward.

    x: (B, in_dim); G: (1, in_dim); W_hat, M_hat: (out_dim, in_dim).
    Returns (B, out_dim) float32.
    """
    batch, in_dim = x.shape
    out_dim = W_hat.shape[0]

    # One-shot weight prep in the wrapper (fused XLA elementwise, executed
    # once — not once per grid step on the kernel's EUP).
    w_eff = (jnp.tanh(W_hat) * jax.nn.sigmoid(M_hat)).T.astype(jnp.float32)  # (in_dim, out_dim)

    tb = _choose_tile_b(batch, in_dim, out_dim)
    grid = (pl.cdiv(batch, tb),)
    # Ragged last tile handled by Pallas partial edge blocks: no wrapper-side
    # jnp.pad of x (no extra HBM round-trip), and the out-of-range edge rows
    # never reach HBM because the output writeback is masked.

    x_spec = pl.BlockSpec((tb, in_dim), lambda i: (i, 0))
    out_spec = pl.BlockSpec((tb, out_dim), lambda i: (i, 0))
    out_shape = jax.ShapeDtypeStruct((batch, out_dim), jnp.float32)
    compiler_params = pltpu.CompilerParams(dimension_semantics=("parallel",))

    # TODO(synk): for very large weights (4*in_dim*out_dim beyond a few MiB),
    # add an out_dim grid axis and tile w_eff instead of keeping it resident.

    if out_dim % 128 != 0:
        # Fold the gate projection in as one extra weight column (free while
        # out_dim+1 stays within the same 128-lane group).
        w_aug = jnp.concatenate([w_eff, G.T.astype(jnp.float32)], axis=1)  # (in_dim, out_dim+1)
        return pl.pallas_call(
            _nalu_kernel_fused_gate,
            out_shape=out_shape,
            grid=grid,
            in_specs=[
                x_spec,
                pl.BlockSpec((in_dim, out_dim + 1), lambda i: (0, 0)),
            ],
            out_specs=out_spec,
            compiler_params=compiler_params,
        )(x, w_aug)

    # out_dim is 128-aligned: keep the NAC weight exactly out_dim lanes wide
    # and compute the gate separately.
    return pl.pallas_call(
        _nalu_kernel_split_gate,
        out_shape=out_shape,
        grid=grid,
        in_specs=[
            x_spec,
            pl.BlockSpec((in_dim, out_dim), lambda i: (0, 0)),
            pl.BlockSpec((1, in_dim), lambda i: (0, 0)),
        ],
        out_specs=out_spec,
        compiler_params=compiler_params,
    )(x, w_eff, G.astype(jnp.float32))


def nalu_reference(x, G, W_hat, M_hat):
    """Pure-JAX reference mirroring the PyTorch forward."""
    W = jnp.tanh(W_hat) * jax.nn.sigmoid(M_hat)
    g = jax.nn.sigmoid(x @ G.T)                       # (B, 1)
    y1 = g * (x @ W.T)
    y2 = (1.0 - g) * jnp.exp(jnp.log(jnp.abs(x) + EPS) @ W.T)
    return y1 + y2


def _make_params(key, in_dim, out_dim):
    kg, kw, km = jax.random.split(key, 3)
    g_std = (2.0 / (in_dim + 1)) ** 0.5              # xavier-normal-ish init
    w_std = (2.0 / (in_dim + out_dim)) ** 0.5
    G = g_std * jax.random.normal(kg, (1, in_dim), dtype=jnp.float32)
    W_hat = w_std * jax.random.normal(kw, (out_dim, in_dim), dtype=jnp.float32)
    M_hat = w_std * jax.random.normal(km, (out_dim, in_dim), dtype=jnp.float32)
    return G, W_hat, M_hat


def _check(batch, in_dim, out_dim, key):
    kp, kx = jax.random.split(key)
    G, W_hat, M_hat = _make_params(kp, in_dim, out_dim)
    x = jax.random.normal(kx, (batch, in_dim), dtype=jnp.float32)

    out = jax.block_until_ready(nalu_forward(x, G, W_hat, M_hat))
    ref = nalu_reference(x, G, W_hat, M_hat)

    assert out.shape == (batch, out_dim), (out.shape, (batch, out_dim))
    assert jnp.allclose(out, ref, atol=1e-4, rtol=1e-4), (
        f"mismatch vs reference at batch={batch}, in_dim={in_dim}, out_dim={out_dim}")


if __name__ == "__main__":
    root = jax.random.PRNGKey(0)
    k0, k1, k2 = jax.random.split(root, 3)

    # Primary small shape (matches the module's linear-layer semantics).
    _check(batch=8, in_dim=32, out_dim=16, key=k0)
    # Gridded path: multiple parallel grid steps + ragged last tile (no pad).
    _check(batch=300, in_dim=32, out_dim=16, key=k1)
    # out_dim % 128 == 0 path: split-gate kernel (no augmented weight column).
    _check(batch=16, in_dim=32, out_dim=128, key=k2)

    print("KERNEL_OK")
</pallas_src>

<mosaic_0001>
module attributes {stable_mosaic.version = 11 : i64} {
  func.func @_nalu_kernel_fused_gate(%arg0: i32, %arg1: memref<8x32xf32, #tpu.memory_space<vmem>>, %arg2: memref<32x17xf32, #tpu.memory_space<vmem>>, %arg3: memref<8x16xf32, #tpu.memory_space<vmem>>) attributes {dimension_semantics = [#tpu.dimension_semantics<parallel>], iteration_bounds = array<i64: 1>, scalar_prefetch = 0 : i64, scratch_operands = 0 : i64, tpu.core_type = #tpu.core_type<tc>, window_params = [{transform_indices = @transform_0, window_bounds = array<i64: 8, 32>}, {pipeline_mode = #tpu.pipeline_mode<synchronous>, transform_indices = @transform_1, window_bounds = array<i64: 32, 17>}, {transform_indices = @transform_2, window_bounds = array<i64: 8, 16>}]} {
    %c0 = arith.constant 0 : index
    %c0_0 = arith.constant 0 : index
    %0 = vector.load %arg1[%c0, %c0_0] : memref<8x32xf32, #tpu.memory_space<vmem>>, vector<8x32xf32>
    %1 = math.absf %0 : vector<8x32xf32>
    %cst = arith.constant 9.99999996E-13 : f32
    %2 = vector.broadcast %cst : f32 to vector<8x32xf32>
    %3 = arith.addf %1, %2 : vector<8x32xf32>
    %4 = math.log %3 : vector<8x32xf32>
    %c0_1 = arith.constant 0 : index
    %c0_2 = arith.constant 0 : index
    %5 = vector.load %arg2[%c0_1, %c0_2] : memref<32x17xf32, #tpu.memory_space<vmem>>, vector<32x17xf32>
    %cst_3 = arith.constant dense<0.000000e+00> : vector<8x17xf32>
    %6 = tpu.matmul %0, %5, %cst_3 {dimension_numbers = #tpu.dot_dimension_numbers<[1], [0], [0], [1], [0, 0, 1, 1], [], []>} : vector<8x32xf32>, vector<32x17xf32>, vector<8x17xf32> -> vector<8x17xf32>
    %cst_4 = arith.constant dense<0.000000e+00> : vector<8x17xf32>
    %7 = tpu.matmul %4, %5, %cst_4 {dimension_numbers = #tpu.dot_dimension_numbers<[1], [0], [0], [1], [0, 0, 1, 1], [], []>} : vector<8x32xf32>, vector<32x17xf32>, vector<8x17xf32> -> vector<8x17xf32>
    %8 = vector.extract_strided_slice %6 {offsets = [0, 16], sizes = [8, 1], strides = [1, 1]} : vector<8x17xf32> to vector<8x1xf32>
    %9 = arith.negf %8 : vector<8x1xf32>
    %10 = math.exp %9 : vector<8x1xf32>
    %cst_5 = arith.constant 1.000000e+00 : f32
    %11 = vector.broadcast %cst_5 : f32 to vector<8x1xf32>
    %12 = arith.addf %11, %10 : vector<8x1xf32>
    %13 = arith.divf %11, %12 : vector<8x1xf32>
    %14 = vector.extract_strided_slice %6 {offsets = [0, 0], sizes = [8, 16], strides = [1, 1]} : vector<8x17xf32> to vector<8x16xf32>
    %15 = vector.extract_strided_slice %7 {offsets = [0, 0], sizes = [8, 16], strides = [1, 1]} : vector<8x17xf32> to vector<8x16xf32>
    %16 = math.exp %15 : vector<8x16xf32>
    %17 = arith.subf %14, %16 : vector<8x16xf32>
    %18 = vector.broadcast %13 : vector<8x1xf32> to vector<8x16xf32>
    %19 = arith.mulf %18, %17 : vector<8x16xf32>
    %20 = arith.addf %16, %19 : vector<8x16xf32>
    %c0_6 = arith.constant 0 : index
    %c0_7 = arith.constant 0 : index
    %21 = vector.load %arg3[%c0_6, %c0_7] : memref<8x16xf32, #tpu.memory_space<vmem>>, vector<8x16xf32>
    tpu.vector_store %arg3[%c0_6, %c0_7], %20 {strides = array<i32>} : memref<8x16xf32, #tpu.memory_space<vmem>>, vector<8x16xf32>,
    return
  }
  func.func @transform_0(%arg0: i32) -> (i32, i32) {
    %c0_i32 = arith.constant 0 : i32
    %c0_i32_0 = arith.constant 0 : i32
    return %arg0, %c0_i32 : i32, i32
  }
  func.func @transform_1(%arg0: i32) -> (i32, i32) {
    %c0_i32 = arith.constant 0 : i32
    %c0_i32_0 = arith.constant 0 : i32
    %c0_i32_1 = arith.constant 0 : i32
    return %c0_i32, %c0_i32_0 : i32, i32
  }
  func.func @transform_2(%arg0: i32) -> (i32, i32) {
    %c0_i32 = arith.constant 0 : i32
    %c0_i32_0 = arith.constant 0 : i32
    return %arg0, %c0_i32 : i32, i32
  }
}

</mosaic_0001>

<llo_original>
// kernel: tpu_custom_call.1
$region0: #{tpu_custom_call.1}
  #allocation0 [shape = 'u32[]', space=smem, size = 0x4, offset = 0x4, fixed_abs, tag = 'smem constant byte address 0x4 - core index']
  #allocation1 [shape = 'u32[72,128]{1,0:T(1,128)}', space=vmem, size = 0x9000, scoped, tag = 'internal scratch']
  %s0 = inlined_call_operand.vmem [shape: f32[8,32], index: 0, kind: input, shape index: {}]
  %s1 = inlined_call_operand.vmem [shape: f32[32,17], index: 1, kind: input, shape index: {}]
  %s2 = inlined_call_operand.hbm [shape: f32[8,16], index: 2, kind: output, shape index: {}]
  %s3 = sld [smem:[#allocation0]]
  $region18: #{tpu_custom_call.1} parent=0
    _
  %s5 = ssub.s32 1, %s3
  %s6 = scalar_select 0, %s5, %s3
  $region1: #{tpu_custom_call.1} parent=0
    #allocation2 [shape = 'u8[4096]{0}', space=vmem, size = 0x1000, scoped, tag = 'output window, operand 0, single buffered']
    #allocation3 [shape = 's32[1]{0}', space=sflag, size = 0x4, scoped, tag = 'scoped memory for tpu_custom_call.1']
    %7 = vsyncpa [#allocation3], 0
    // Predicated region
    $region2: #{tpu_custom_call.1} parent=1 // pred_check
      _
    $region3: #{tpu_custom_call.1} parent=1 // pred_check_branch
      %9 = sbr.rel (0) target = $region5
    $region4: #{tpu_custom_call.1} parent=1 // pred_region
      _
    $region5: #{tpu_custom_call.1} parent=1 // pred_fallthru
      _
    // Predicated region
    $region6: #{tpu_custom_call.1} parent=1 // pred_check
      _
    $region7: #{tpu_custom_call.1} parent=1 // pred_check_branch
      %11 = sbr.rel (0) target = $region9
    $region8: #{tpu_custom_call.1} parent=1 // pred_region
      _
    $region9: #{tpu_custom_call.1} parent=1 // pred_fallthru
      _
    %v12 = vld [vmem:[%s0] sm:$0xff]
    %v13 = vand.u32 2147483647, %v12
    %v14 = vadd.f32 %v13, 1e-12
    %v15 = vlog2.pop %v14
    %v16 = vmul.f32 %v15, 0.6931472
    %v17 = vld [vmem:[%s1] sm:$0xff]
    %v18 = vld [vmem:[%s1 + $0x8] sm:$0xff]
    %v19 = vld [vmem:[%s1 + $0x10] sm:$0xff]
    %v20 = vld [vmem:[%s1 + $0x18] sm:$0xff]
    %vm21 = vcmask 261120
    %v23 = vsel %vm21, %v12, 0
    %25 = vmatpush.msra.mxu0 0.0
    %26 = vmatpush.msra.mxu0 0.0
    %27 = vmatpush.msra.mxu0 0.0
    %28 = vmatpush.msra.mxu0 0.0
    %29 = vmatpush.msra.mxu0 0.0
    %30 = vmatpush.msra.mxu0 0.0
    %31 = vmatpush.msra.mxu0 0.0
    %32 = vmatpush.msra.mxu0 0.0
    %33 = vmatpush.msra.mxu0 0.0
    %34 = vmatpush.msra.mxu0 0.0
    %35 = vmatpush.msra.mxu0 0.0
    %36 = vmatpush.msra.mxu0 0.0
    %37 = vmatpush.msra.mxu0 %v20
    %38 = vmatpush.msra.mxu0 %v19
    %39 = vmatpush.msra.mxu0 %v18
    %40 = vmatpush.msra.mxu0 %v17
    %41 = vmatmul.f32.gmra.mxu0 %v23
    %v42 = vpop.f32.mrf.mxu0
    %v43 = vadd.f32 0.0, %v42
    %44 = vdwg.mxu0
    %v46 = vsel %vm21, %v16, 0
    %48 = vmatpush.msra.mxu0 0.0
    %49 = vmatpush.msra.mxu0 0.0
    %50 = vmatpush.msra.mxu0 0.0
    %51 = vmatpush.msra.mxu0 0.0
    %52 = vmatpush.msra.mxu0 0.0
    %53 = vmatpush.msra.mxu0 0.0
    %54 = vmatpush.msra.mxu0 0.0
    %55 = vmatpush.msra.mxu0 0.0
    %56 = vmatpush.msra.mxu0 0.0
    %57 = vmatpush.msra.mxu0 0.0
    %58 = vmatpush.msra.mxu0 0.0
    %59 = vmatpush.msra.mxu0 0.0
    %60 = vmatpush.msra.mxu0 %v20
    %61 = vmatpush.msra.mxu0 %v19
    %62 = vmatpush.msra.mxu0 %v18
    %63 = vmatpush.msra.mxu0 %v17
    %64 = vmatmul.f32.gmra.mxu0 %v46
    %v65 = vpop.f32.mrf.mxu0
    %v66 = vadd.f32 0.0, %v65
    %67 = vdwg.mxu0
    %v68 = vxor.u32 %v43, 2147483648
    %v69 = vmul.f32 %v68, 1.442695
    %v70 = vpow.pop %v69
    %v71 = vadd.f32 %v70, 1.0
    %v72 = vrcp.pop %v71
    %v73 = vmul.f32 %v71, %v72
    %v74 = vsub.f32 1.0, %v73
    %v75 = vmul.f32 %v72, %v74
    %v76 = vadd.f32 %v72, %v75
    %vm77 = vweird.f32 %v71
    %vm78 = vweird.f32 %v72
    %vm79 = vmor %vm77, %vm78
    %v80 = vsel %vm79, %v72, %v76
    %v81 = vand.u32 2147483647, %v71
    %vm82 = vcmp.eq.f32.partialorder %v81, 8.507059e+37
    %v83 = vand.u32 %v71, 2147483648
    %v84 = vor.u32 1.1754944e-38, %v83
    %v85 = vsel %vm82, %v84, %v80
    %v86 = vmul.f32 1.0, %v85
    %v87 = vmul.f32 %v66, 1.442695
    %v88 = vpow.pop %v87
    %v89 = vsub.f32 %v43, %v88
    %91 = vset.pattern.permute.xlu0 16
    %92 = vperm.xlu0 %91, %v86
    %v93 = vpop.permute.xlu0 %92
    %v95 = vmul.f32 %v93, %v89
    %v96 = vadd.f32 %v88, %v95
    %vm97 = vcmask 130048
    %98 = vst.msk [vmem:[#allocation2] sm:$0xff] %vm97, %v96
    // Predicated region
    $region10: #{tpu_custom_call.1} parent=1 // pred_check
      _
    $region11: #{tpu_custom_call.1} parent=1 // pred_check_branch
      %100 = sbr.rel (0) target = $region13
    $region12: #{tpu_custom_call.1} parent=1 // pred_region
      %102 = vsyncadd [#allocation3], 0
      %s104 = sshll.u32 [#allocation2], 4
      %s105 = int_to_ptr.vmem [resolvable:$true] %s104
      %s106 = sshll.u32 %s2, 4
      %s107 = int_to_ptr.hbm [resolvable:$true] %s106
      %109 = dma.vmem_to_hbm [thread:$0]  %s105, 128, %s107, [#allocation3]
    $region13: #{tpu_custom_call.1} parent=1 // pred_fallthru
      _
    // Predicated region
    $region14: #{tpu_custom_call.1} parent=1 // pred_check
      _
    $region15: #{tpu_custom_call.1} parent=1 // pred_check_branch
      %111 = sbr.rel (0) target = $region17
    $region16: #{tpu_custom_call.1} parent=1 // pred_region
      %113 = dma.done [#allocation3], 128
    $region17: #{tpu_custom_call.1} parent=1 // pred_fallthru
      _
    %114 = vsyncpa [#allocation3], 1

</llo_original>
